<compile_context>
chip_gen: v6e
topology: v6e:2x2x1
jax: 0.10.0
libtpu: 0.0.40
codegen_flags: <defaults>
</compile_context>

<pallas_src>
import functools

import jax
import jax.numpy as jnp
from jax.experimental import pallas as pl
from jax.experimental.pallas import tpu as pltpu

_MIB = 1024 * 1024


def _round_up(x, m):
    return ((x + m - 1) // m) * m


# -----------------------------------------------------------------------------
# Kernels
# -----------------------------------------------------------------------------

def _linear_kernel(x_ref, w_ref, b_ref, o_ref):
    """One output tile with the full K in one shot: o = x @ w + b (identity act)."""
    acc = jnp.dot(x_ref[...], w_ref[...], preferred_element_type=jnp.float32)
    o_ref[...] = (acc + b_ref[...].astype(jnp.float32)).astype(o_ref.dtype)


def _linear_reduce_kernel(x_ref, w_ref, b_ref, o_ref, acc_ref):
    """One output tile; K reduced over the innermost grid axis (f32 accumulator)."""
    k = pl.program_id(2)

    @pl.when(k == 0)
    def _():
        acc_ref[...] = jnp.zeros_like(acc_ref)

    acc_ref[...] += jnp.dot(x_ref[...], w_ref[...],
                            preferred_element_type=jnp.float32)

    @pl.when(k == pl.num_programs(2) - 1)
    def _():
        o_ref[...] = (acc_ref[...] + b_ref[...].astype(jnp.float32)).astype(o_ref.dtype)


# -----------------------------------------------------------------------------
# Wrapper
# -----------------------------------------------------------------------------

@functools.partial(
    jax.jit,
    static_argnames=("compute_dtype", "tm", "tn", "tk",
                     "tiny_limit_bytes", "resident_limit_bytes"),
)
def encoder_forward(x, w_t, b, *, compute_dtype=None, tm=None, tn=None, tk=None,
                    tiny_limit_bytes=4 * _MIB, resident_limit_bytes=12 * _MIB):
    """y = act1(x @ w_t + b) with act1 = identity  (Encoder.forward).

    x:   (B, in_features)
    w_t: (in_features, out_features)  -- transposed torch weight.  For repeated
         calls with compute_dtype=bfloat16, pre-cast w_t once at setup time so
         the cast is not a per-call HBM pass.
    b:   (out_features,) or (1, out_features)
    """
    B, in_f = x.shape
    assert w_t.shape[0] == in_f
    out_f = w_t.shape[1]
    out_dtype = x.dtype
    if compute_dtype is None:
        compute_dtype = x.dtype          # exact nn.Linear f32 semantics by default
    csz = jnp.dtype(compute_dtype).itemsize
    osz = jnp.dtype(out_dtype).itemsize

    xc = x.astype(compute_dtype)         # no-op when dtypes already match
    wc = w_t.astype(compute_dtype)
    b2 = b.reshape(1, out_f)             # bias stays f32: exact add before cast

    # ----------------------------------------------------------------- Path A
    # Tiny problem: single tile, full-array blocks (legal for any dims), no
    # padding, no K axis, no accumulator.
    tiny_bytes = (B * in_f + in_f * out_f + out_f) * csz + B * out_f * osz
    if tiny_bytes <= tiny_limit_bytes and B <= 4096:
        return pl.pallas_call(
            _linear_kernel,
            out_shape=jax.ShapeDtypeStruct((B, out_f), out_dtype),
            grid=(1,),
            in_specs=[
                pl.BlockSpec((B, in_f), lambda i: (0, 0)),
                pl.BlockSpec((in_f, out_f), lambda i: (0, 0)),
                pl.BlockSpec((1, out_f), lambda i: (0, 0)),
            ],
            out_specs=pl.BlockSpec((B, out_f), lambda i: (0, 0)),
            compiler_params=pltpu.CompilerParams(
                dimension_semantics=("arbitrary",)),
        )(xc, wc, b2)

    # ----------------------------------------------------------------- Path B
    # Weight-resident: the full (in_f, out_f) panel uses a constant block index,
    # so Pallas DMAs it from HBM exactly once and keeps it VMEM-resident while
    # only the batch is tiled.  No K padding, no accumulator.  Best for
    # B >> out_features.  (pipeline_mode=pl.Buffered(1) on the weight spec could
    # drop its second buffer; not needed within this budget.)
    w_bytes = in_f * out_f * csz
    if tm is None:
        tile_budget = 6 * _MIB           # per x / per out buffer
        tm_b = min(1024,
                   max(8, tile_budget // max(1, in_f * csz)),
                   max(8, tile_budget // max(1, out_f * osz)))
        tm_b = max(8, (tm_b // 8) * 8)
    else:
        tm_b = tm
    tm_b = min(tm_b, _round_up(B, 8))
    ws_resident = (2 * tm_b * in_f * csz + 2 * w_bytes
                   + 2 * tm_b * out_f * osz + 2 * out_f * 4)

    if w_bytes <= resident_limit_bytes and ws_resident <= 44 * _MIB:
        B_p = _round_up(B, tm_b)
        xp = xc if B_p == B else jnp.pad(xc, ((0, B_p - B), (0, 0)))
        ni = B_p // tm_b
        vmem_limit = int(min(48 * _MIB, max(32 * _MIB, ws_resident + 4 * _MIB)))
        cost = pl.CostEstimate(
            flops=2 * B_p * in_f * out_f, transcendentals=0,
            bytes_accessed=(B_p * in_f * csz + w_bytes + out_f * 4
                            + B_p * out_f * osz))
        out = pl.pallas_call(
            _linear_kernel,
            out_shape=jax.ShapeDtypeStruct((B_p, out_f), out_dtype),
            grid=(ni,),
            in_specs=[
                pl.BlockSpec((tm_b, in_f), lambda i: (i, 0)),
                pl.BlockSpec((in_f, out_f), lambda i: (0, 0)),   # resident weight
                pl.BlockSpec((1, out_f), lambda i: (0, 0)),
            ],
            out_specs=pl.BlockSpec((tm_b, out_f), lambda i: (i, 0)),
            compiler_params=pltpu.CompilerParams(
                dimension_semantics=("parallel",),
                vmem_limit_bytes=vmem_limit),
            cost_estimate=cost,
        )(xp, wc, b2)
        return out if B_p == B else out[:B]

    # ----------------------------------------------------------------- Path C
    # General tiled matmul.  Batch axis leads the grid (megacore-friendly on
    # v7x even when out_features is small); K is innermost ("arbitrary").
    tm_c = min(_round_up(B, 8), 512) if tm is None else tm
    tn_c = min(_round_up(out_f, 128), 512) if tn is None else tn
    tk_c = min(_round_up(in_f, 128), 1024) if tk is None else tk

    B_p = _round_up(B, tm_c)
    N_p = _round_up(out_f, tn_c)
    ni, nj = B_p // tm_c, N_p // tn_c

    xp = xc if B_p == B else jnp.pad(xc, ((0, B_p - B), (0, 0)))
    wp = wc if N_p == out_f else jnp.pad(wc, ((0, 0), (0, N_p - out_f)))
    bp = b2 if N_p == out_f else jnp.pad(b2, ((0, 0), (0, N_p - out_f)))

    if in_f <= tk_c:
        # Single K tile: full-K blocks (no K padding), no accumulator, no pl.when.
        ws = (2 * (tm_c * in_f + in_f * tn_c) * csz
              + 2 * tm_c * tn_c * osz + 2 * tn_c * 4)
        vmem_limit = int(min(48 * _MIB, max(32 * _MIB, ws + 4 * _MIB)))
        cost = pl.CostEstimate(
            flops=2 * B_p * in_f * N_p, transcendentals=0,
            bytes_accessed=(B_p * in_f * csz + ni * in_f * N_p * csz
                            + N_p * 4 + B_p * N_p * osz))
        out = pl.pallas_call(
            _linear_kernel,
            out_shape=jax.ShapeDtypeStruct((B_p, N_p), out_dtype),
            grid=(ni, nj),
            in_specs=[
                pl.BlockSpec((tm_c, in_f), lambda i, j: (i, 0)),
                pl.BlockSpec((in_f, tn_c), lambda i, j: (0, j)),
                pl.BlockSpec((1, tn_c), lambda i, j: (0, j)),
            ],
            out_specs=pl.BlockSpec((tm_c, tn_c), lambda i, j: (i, j)),
            compiler_params=pltpu.CompilerParams(
                dimension_semantics=("parallel", "parallel"),
                vmem_limit_bytes=vmem_limit),
            cost_estimate=cost,
        )(xp, wp, bp)
    else:
        K_p = _round_up(in_f, tk_c)
        nk = K_p // tk_c
        xp = xp if K_p == in_f else jnp.pad(xp, ((0, 0), (0, K_p - in_f)))
        wp = wp if K_p == in_f else jnp.pad(wp, ((0, K_p - in_f), (0, 0)))
        ws = (2 * (tm_c * tk_c + tk_c * tn_c) * csz
              + 2 * tm_c * tn_c * osz + tm_c * tn_c * 4 + 2 * tn_c * 4)
        vmem_limit = int(min(48 * _MIB, max(32 * _MIB, ws + 4 * _MIB)))
        cost = pl.CostEstimate(
            flops=2 * B_p * K_p * N_p, transcendentals=0,
            bytes_accessed=(nj * B_p * K_p * csz + ni * K_p * N_p * csz
                            + N_p * 4 + B_p * N_p * osz))
        out = pl.pallas_call(
            _linear_reduce_kernel,
            out_shape=jax.ShapeDtypeStruct((B_p, N_p), out_dtype),
            grid=(ni, nj, nk),
            in_specs=[
                pl.BlockSpec((tm_c, tk_c), lambda i, j, k: (i, k)),
                pl.BlockSpec((tk_c, tn_c), lambda i, j, k: (k, j)),
                pl.BlockSpec((1, tn_c), lambda i, j, k: (0, j)),
            ],
            out_specs=pl.BlockSpec((tm_c, tn_c), lambda i, j, k: (i, j)),
            scratch_shapes=[pltpu.VMEM((tm_c, tn_c), jnp.float32)],
            compiler_params=pltpu.CompilerParams(
                dimension_semantics=("parallel", "parallel", "arbitrary"),
                vmem_limit_bytes=vmem_limit),
            cost_estimate=cost,
        )(xp, wp, bp)

    if B_p != B or N_p != out_f:
        out = out[:B, :out_f]
    return out


def make_encoder_params(key, in_features, out_features, dtype=jnp.float32):
    """Deterministic init mimicking torch.nn.Linear's uniform(-k, k), k=1/sqrt(in)."""
    k = 1.0 / float(in_features) ** 0.5
    kw, kb = jax.random.split(key)
    # PyTorch stores weight as (out, in); we keep the transposed (in, out) form.
    w = jax.random.uniform(kw, (out_features, in_features), dtype, -k, k)
    b = jax.random.uniform(kb, (out_features,), dtype, -k, k)
    return w.T, b


if __name__ == "__main__":
    key = jax.random.PRNGKey(0)
    k_x, k_p = jax.random.split(key)

    # Encoder(in_features=32, hidden_features=16, out_features=32); forward only
    # applies self._l1 + identity act1, so hidden_features is unused.
    batch, in_features, out_features = 8, 32, 32

    x = jax.random.normal(k_x, (batch, in_features), jnp.float32)
    w_t, b = make_encoder_params(k_p, in_features, out_features)
    y_ref = x @ w_t + b[None, :]

    # 1) Default path (tiny-problem fast path: one tile, no padding).
    y = jax.block_until_ready(encoder_forward(x, w_t, b))
    assert y.shape == (batch, out_features)
    assert jnp.allclose(y, y_ref, atol=1e-5, rtol=1e-5)

    # 2) Weight-resident path (batch-tiled, VMEM-resident weight panel).
    y_b = jax.block_until_ready(encoder_forward(x, w_t, b, tiny_limit_bytes=0))
    assert jnp.allclose(y_b, y_ref, atol=1e-5, rtol=1e-5)

    # 3) General tiled path incl. the K-reduction kernel (nk > 1), small shapes.
    x2 = jax.random.normal(k_x, (64, 256), jnp.float32)
    w_t2, b_2 = make_encoder_params(k_p, 256, 192)
    y2_ref = x2 @ w_t2 + b_2[None, :]
    y2 = jax.block_until_ready(
        encoder_forward(x2, w_t2, b_2, tiny_limit_bytes=0, resident_limit_bytes=0,
                        tm=32, tn=128, tk=128))
    assert y2.shape == (64, 192)
    assert jnp.allclose(y2, y2_ref, atol=1e-4, rtol=1e-4)

    print("KERNEL_OK")
</pallas_src>

<mosaic_0001>
module attributes {stable_mosaic.version = 11 : i64} {
  func.func @_linear_kernel(%arg0: i32, %arg1: memref<8x32xf32, #tpu.memory_space<vmem>>, %arg2: memref<32x32xf32, #tpu.memory_space<vmem>>, %arg3: memref<1x32xf32, #tpu.memory_space<vmem>>, %arg4: memref<8x32xf32, #tpu.memory_space<vmem>>) attributes {dimension_semantics = [#tpu.dimension_semantics<arbitrary>], iteration_bounds = array<i64: 1>, scalar_prefetch = 0 : i64, scratch_operands = 0 : i64, tpu.core_type = #tpu.core_type<tc>, window_params = [{pipeline_mode = #tpu.pipeline_mode<synchronous>, transform_indices = @transform_0, window_bounds = array<i64: 8, 32>}, {pipeline_mode = #tpu.pipeline_mode<synchronous>, transform_indices = @transform_1, window_bounds = array<i64: 32, 32>}, {pipeline_mode = #tpu.pipeline_mode<synchronous>, transform_indices = @transform_2, window_bounds = array<i64: 1, 32>}, {pipeline_mode = #tpu.pipeline_mode<synchronous>, transform_indices = @transform_3, window_bounds = array<i64: 8, 32>}]} {
    %c0 = arith.constant 0 : index
    %c0_0 = arith.constant 0 : index
    %0 = vector.load %arg1[%c0, %c0_0] : memref<8x32xf32, #tpu.memory_space<vmem>>, vector<8x32xf32>
    %c0_1 = arith.constant 0 : index
    %c0_2 = arith.constant 0 : index
    %1 = vector.load %arg2[%c0_1, %c0_2] : memref<32x32xf32, #tpu.memory_space<vmem>>, vector<32x32xf32>
    %cst = arith.constant dense<0.000000e+00> : vector<8x32xf32>
    %2 = tpu.matmul %0, %1, %cst {dimension_numbers = #tpu.dot_dimension_numbers<[1], [0], [0], [1], [0, 0, 1, 1], [], []>} : vector<8x32xf32>, vector<32x32xf32>, vector<8x32xf32> -> vector<8x32xf32>
    %c0_3 = arith.constant 0 : index
    %c0_4 = arith.constant 0 : index
    %3 = vector.load %arg3[%c0_3, %c0_4] : memref<1x32xf32, #tpu.memory_space<vmem>>, vector<1x32xf32>
    %4 = vector.broadcast %3 : vector<1x32xf32> to vector<8x32xf32>
    %5 = arith.addf %2, %4 : vector<8x32xf32>
    %c0_5 = arith.constant 0 : index
    %c0_6 = arith.constant 0 : index
    %6 = vector.load %arg4[%c0_5, %c0_6] : memref<8x32xf32, #tpu.memory_space<vmem>>, vector<8x32xf32>
    tpu.vector_store %arg4[%c0_5, %c0_6], %5 {strides = array<i32>} : memref<8x32xf32, #tpu.memory_space<vmem>>, vector<8x32xf32>,
    return
  }
  func.func @transform_0(%arg0: i32) -> (i32, i32) {
    %c0_i32 = arith.constant 0 : i32
    %c0_i32_0 = arith.constant 0 : i32
    %c0_i32_1 = arith.constant 0 : i32
    return %c0_i32, %c0_i32_0 : i32, i32
  }
  func.func @transform_1(%arg0: i32) -> (i32, i32) {
    %c0_i32 = arith.constant 0 : i32
    %c0_i32_0 = arith.constant 0 : i32
    %c0_i32_1 = arith.constant 0 : i32
    return %c0_i32, %c0_i32_0 : i32, i32
  }
  func.func @transform_2(%arg0: i32) -> (i32, i32) {
    %c0_i32 = arith.constant 0 : i32
    %c0_i32_0 = arith.constant 0 : i32
    %c0_i32_1 = arith.constant 0 : i32
    return %c0_i32, %c0_i32_0 : i32, i32
  }
  func.func @transform_3(%arg0: i32) -> (i32, i32) {
    %c0_i32 = arith.constant 0 : i32
    %c0_i32_0 = arith.constant 0 : i32
    %c0_i32_1 = arith.constant 0 : i32
    return %c0_i32, %c0_i32_0 : i32, i32
  }
}

</mosaic_0001>

<llo_original>
// kernel: encoder_forward.1
$region0: #{encoder_forward.1}
  #allocation0 [shape = 'u32[]', space=smem, size = 0x4, offset = 0x4, fixed_abs, tag = 'smem constant byte address 0x4 - core index']
  #allocation1 [shape = 'u32[144,128]{1,0:T(1,128)}', space=vmem, size = 0x12000, scoped, tag = 'internal scratch']
  %s0 = inlined_call_operand.hbm [shape: f32[8,32], index: 0, kind: input, shape index: {}]
  %s1 = inlined_call_operand.hbm [shape: f32[32,32], index: 1, kind: input, shape index: {}]
  %s2 = inlined_call_operand.vmem [shape: f32[1,32], index: 2, kind: input, shape index: {}]
  %s3 = inlined_call_operand.hbm [shape: f32[8,32], index: 3, kind: output, shape index: {}]
  %s4 = sld [smem:[#allocation0]]
  $region30: #{encoder_forward.1} parent=0
    _
  %s6 = ssub.s32 1, %s4
  %s7 = scalar_select 0, %s6, %s4
  $region1: #{encoder_forward.1} parent=0
    #allocation2 [shape = 'u8[4096]{0}', space=vmem, size = 0x1000, scoped, tag = 'input window, operand 0, single buffered']
    #allocation3 [shape = 's32[1]{0}', space=sflag, size = 0x4, scoped, tag = 'scoped memory for encoder_forward.1']
    #allocation4 [shape = 's32[1]{0}', space=sflag, size = 0x4, scoped, tag = 'scoped memory for encoder_forward.1']
    #allocation5 [shape = 'u8[16384]{0}', space=vmem, size = 0x4000, scoped, tag = 'input window, operand 1, single buffered']
    #allocation6 [shape = 's32[1]{0}', space=sflag, size = 0x4, scoped, tag = 'scoped memory for encoder_forward.1']
    #allocation7 [shape = 'u8[4096]{0}', space=vmem, size = 0x1000, scoped, tag = 'output window, operand 0, single buffered']
    %8 = vsyncpa [#allocation3], 0
    %9 = vsyncpa [#allocation6], 0
    %10 = vsyncpa [#allocation4], 0
    // Predicated region
    $region2: #{encoder_forward.1} parent=1 // pred_check
      _
    $region3: #{encoder_forward.1} parent=1 // pred_check_branch
      %12 = sbr.rel (0) target = $region5
    $region4: #{encoder_forward.1} parent=1 // pred_region
      %s14 = ssub.s32 128, 128
      %15 = vsyncadd [#allocation3], %s14
      %s17 = sshll.u32 [#allocation2], 4
      %s18 = int_to_ptr.vmem [resolvable:$true] %s17
      %20 = dma.hbm_to_vmem [thread:$0]  %s0, 128, %s18, [#allocation3]
    $region5: #{encoder_forward.1} parent=1 // pred_fallthru
      _
    // Predicated region
    $region6: #{encoder_forward.1} parent=1 // pred_check
      _
    $region7: #{encoder_forward.1} parent=1 // pred_check_branch
      %22 = sbr.rel (0) target = $region9
    $region8: #{encoder_forward.1} parent=1 // pred_region
      %s24 = ssub.s32 512, 512
      %25 = vsyncadd [#allocation6], %s24
      %s26 = sshll.u32 [#allocation5], 4
      %s27 = int_to_ptr.vmem [resolvable:$true] %s26
      %32 = dma.hbm_to_vmem [thread:$0]  %s1, 512, %s27, [#allocation6], 128, 128, 8
    $region9: #{encoder_forward.1} parent=1 // pred_fallthru
      _
    // Predicated region
    $region10: #{encoder_forward.1} parent=1 // pred_check
      _
    $region11: #{encoder_forward.1} parent=1 // pred_check_branch
      %34 = sbr.rel (0) target = $region13
    $region12: #{encoder_forward.1} parent=1 // pred_region
      _
    $region13: #{encoder_forward.1} parent=1 // pred_fallthru
      _
    // Predicated region
    $region14: #{encoder_forward.1} parent=1 // pred_check
      _
    $region15: #{encoder_forward.1} parent=1 // pred_check_branch
      %36 = sbr.rel (0) target = $region17
    $region16: #{encoder_forward.1} parent=1 // pred_region
      %37 = dma.done [#allocation3], 128
    $region17: #{encoder_forward.1} parent=1 // pred_fallthru
      _
    // Predicated region
    $region18: #{encoder_forward.1} parent=1 // pred_check
      _
    $region19: #{encoder_forward.1} parent=1 // pred_check_branch
      %39 = sbr.rel (0) target = $region21
    $region20: #{encoder_forward.1} parent=1 // pred_region
      %40 = dma.done [#allocation6], 512
    $region21: #{encoder_forward.1} parent=1 // pred_fallthru
      _
    %v41 = vld [vmem:[#allocation2] sm:$0xff]
    %v42 = vld [vmem:[#allocation5] sm:$0xff]
    %v43 = vld [vmem:[#allocation5 + $0x8] sm:$0xff]
    %v44 = vld [vmem:[#allocation5 + $0x10] sm:$0xff]
    %v45 = vld [vmem:[#allocation5 + $0x18] sm:$0xff]
    %v46 = vld [vmem:[%s2] sm:$0x1]
    %v48 = vlaneseq
    %v49 = vshrl.u32 %v48, 7
    %v50 = vsub.s32 0, %v49
    %v51 = vrot.slane %v46, %v50
    %vm53 = vcmask 261120
    %v55 = vsel %vm53, %v41, 0
    %57 = vmatprep.subr.mxu0 0.0
    %58 = vmatpush1.msra.mxu0 0.0
    %59 = vmatprep.subr.mxu0 0.0
    %60 = vmatpush1.msra.mxu0 0.0
    %61 = vmatprep.subr.mxu0 0.0
    %62 = vmatpush1.msra.mxu0 0.0
    %63 = vmatprep.subr.mxu0 0.0
    %64 = vmatpush1.msra.mxu0 0.0
    %65 = vmatprep.subr.mxu0 0.0
    %66 = vmatpush1.msra.mxu0 0.0
    %67 = vmatprep.subr.mxu0 0.0
    %68 = vmatpush1.msra.mxu0 0.0
    %69 = vmatprep.subr.mxu0 0.0
    %70 = vmatpush1.msra.mxu0 0.0
    %71 = vmatprep.subr.mxu0 0.0
    %72 = vmatpush1.msra.mxu0 0.0
    %73 = vmatprep.subr.mxu0 0.0
    %74 = vmatpush1.msra.mxu0 0.0
    %75 = vmatprep.subr.mxu0 0.0
    %76 = vmatpush1.msra.mxu0 0.0
    %77 = vmatprep.subr.mxu0 0.0
    %78 = vmatpush1.msra.mxu0 0.0
    %79 = vmatprep.subr.mxu0 0.0
    %80 = vmatpush1.msra.mxu0 0.0
    %81 = vmatprep.subr.mxu0 0.0
    %82 = vmatpush1.msra.mxu0 %v45
    %83 = vmatprep.subr.mxu0 0.0
    %84 = vmatpush1.msra.mxu0 %v44
    %85 = vmatprep.subr.mxu0 0.0
    %86 = vmatpush1.msra.mxu0 %v43
    %87 = vmatprep.subr.mxu0 0.0
    %88 = vmatpush1.msra.mxu0 %v42
    %89 = vmatprep.subr.mxu0 0.0
    %90 = vmatpush2.msra.mxu0 0.0
    %91 = vmatprep.subr.mxu0 0.0
    %92 = vmatpush2.msra.mxu0 0.0
    %93 = vmatprep.subr.mxu0 0.0
    %94 = vmatpush2.msra.mxu0 0.0
    %95 = vmatprep.subr.mxu0 0.0
    %96 = vmatpush2.msra.mxu0 0.0
    %97 = vmatprep.subr.mxu0 0.0
    %98 = vmatpush2.msra.mxu0 0.0
    %99 = vmatprep.subr.mxu0 0.0
    %100 = vmatpush2.msra.mxu0 0.0
    %101 = vmatprep.subr.mxu0 0.0
    %102 = vmatpush2.msra.mxu0 0.0
    %103 = vmatprep.subr.mxu0 0.0
    %104 = vmatpush2.msra.mxu0 0.0
    %105 = vmatprep.subr.mxu0 0.0
    %106 = vmatpush2.msra.mxu0 0.0
    %107 = vmatprep.subr.mxu0 0.0
    %108 = vmatpush2.msra.mxu0 0.0
    %109 = vmatprep.subr.mxu0 0.0
    %110 = vmatpush2.msra.mxu0 0.0
    %111 = vmatprep.subr.mxu0 0.0
    %112 = vmatpush2.msra.mxu0 0.0
    %113 = vmatprep.subr.mxu0 0.0
    %114 = vmatpush2.msra.mxu0 0.0
    %115 = vmatprep.subr.mxu0 0.0
    %116 = vmatpush2.msra.mxu0 0.0
    %117 = vmatprep.subr.mxu0 0.0
    %118 = vmatpush2.msra.mxu0 0.0
    %119 = vmatprep.subr.mxu0 0.0
    %120 = vmatpush2.msra.mxu0 0.0
    %121 = vmatprep.mubr.f32.mxu0 0.0
    %122 = vmatmul.mubr.f32.gmra.mxu0 %v55
    %v123 = vpop.f32.mrf.mxu0
    %v124 = vadd.f32 %v51, %v123
    %v125 = vpop.f32.mrf.mxu0
    %126 = vdwg.mxu0
    %127 = vst.msk [vmem:[#allocation7] sm:$0xff] %vm53, %v124
    // Predicated region
    $region22: #{encoder_forward.1} parent=1 // pred_check
      _
    $region23: #{encoder_forward.1} parent=1 // pred_check_branch
      %129 = sbr.rel (0) target = $region25
    $region24: #{encoder_forward.1} parent=1 // pred_region
      %s131 = ssub.s32 128, 128
      %132 = vsyncadd [#allocation4], %s131
      %s134 = sshll.u32 [#allocation7], 4
      %s135 = int_to_ptr.vmem [resolvable:$true] %s134
      %137 = dma.vmem_to_hbm [thread:$0]  %s135, 128, %s3, [#allocation4]
    $region25: #{encoder_forward.1} parent=1 // pred_fallthru
      _
    // Predicated region
    $region26: #{encoder_forward.1} parent=1 // pred_check
      _
    $region27: #{encoder_forward.1} parent=1 // pred_check_branch
      %139 = sbr.rel (0) target = $region29
    $region28: #{encoder_forward.1} parent=1 // pred_region
      %140 = dma.done [#allocation4], 128
    $region29: #{encoder_forward.1} parent=1 // pred_fallthru
      _
    %141 = vsyncpa [#allocation3], 1
    %142 = vsyncpa [#allocation6], 1
    %143 = vsyncpa [#allocation4], 1

</llo_original>
